<compile_context>
chip_gen: v5e
topology: v5e:2x2
jax: 0.10.0
libtpu: 0.0.40
codegen_flags: <defaults>
</compile_context>

<pallas_src>
import math
from functools import partial

import jax
import jax.numpy as jnp
from jax import lax
from jax.experimental import pallas as pl
from jax.experimental.pallas import tpu as pltpu


# ----------------------------------------------------------------------------
# Per-generation defaults (tile targets + scoped-VMEM budget).
# ----------------------------------------------------------------------------
def _tpu_defaults():
    kind = ""
    try:
        kind = (jax.devices()[0].device_kind or "").lower()
    except Exception:
        pass
    if "v7" in kind:
        # v7x: 64 MiB physical VMEM per TensorCore -> claim ~48 MiB, moderate tiles.
        return {"tm": 256, "tn": 256, "tk": 512, "vmem": 48 * 1024 * 1024}
    if "v5" in kind or "v6" in kind:
        # 128 MiB VMEM: bigger tiles amortize the ~0.35us per-grid-step overhead.
        return {"tm": 512, "tn": 512, "tk": 1024, "vmem": 64 * 1024 * 1024}
    # Unknown / interpret mode: conservative.
    return {"tm": 256, "tn": 256, "tk": 512, "vmem": 48 * 1024 * 1024}


def _pick_tile(dim, target, align):
    """Largest tile <= target that divides `dim`, preferring multiples of
    `align`.  Never returns more than max(dim, target) worth of elements, so a
    pathological dim cannot silently blow the VMEM budget."""
    if dim <= target:
        return dim
    t = (target // align) * align
    while t >= align:
        if dim % t == 0:
            return t
        t -= align
    # No aligned divisor: any divisor <= target still bounds VMEM (slower).
    # TODO(synk): truly awkward lane dims would need cdiv grids + edge masking.
    for t in range(target, 0, -1):
        if dim % t == 0:
            return t
    return dim


# ----------------------------------------------------------------------------
# Kernel 1: tiled GEMM  out = x @ w  with an f32 VMEM accumulator.
# Used for the QKV projections (packed weight for self-attention) and W_O.
# ----------------------------------------------------------------------------
def _matmul_kernel(x_ref, w_ref, o_ref, acc_ref):
    @pl.when(pl.program_id(2) == 0)
    def _init():
        acc_ref[...] = jnp.zeros_like(acc_ref)

    acc_ref[...] += jnp.dot(
        x_ref[...], w_ref[...], preferred_element_type=jnp.float32
    )

    @pl.when(pl.program_id(2) == pl.num_programs(2) - 1)
    def _store():
        o_ref[...] = acc_ref[...].astype(o_ref.dtype)


def pallas_matmul(x, w, *, out_dtype=None):
    M, K = x.shape
    K2, N = w.shape
    assert K == K2
    d = _tpu_defaults()
    tm = _pick_tile(M, d["tm"], 8)
    tn = _pick_tile(N, d["tn"], 128)
    tk = _pick_tile(K, d["tk"], 128)
    grid = (M // tm, N // tn, K // tk)
    out_dtype = out_dtype if out_dtype is not None else x.dtype

    cost = pl.CostEstimate(
        flops=int(2 * M * N * K),
        transcendentals=0,
        bytes_accessed=int(x.dtype.itemsize * (M * K + K * N)
                           + jnp.dtype(out_dtype).itemsize * M * N),
    )
    return pl.pallas_call(
        _matmul_kernel,
        out_shape=jax.ShapeDtypeStruct((M, N), out_dtype),
        grid=grid,
        in_specs=[
            pl.BlockSpec((tm, tk), lambda i, j, kk: (i, kk)),
            pl.BlockSpec((tk, tn), lambda i, j, kk: (kk, j)),
        ],
        out_specs=pl.BlockSpec((tm, tn), lambda i, j, kk: (i, j)),
        scratch_shapes=[pltpu.VMEM((tm, tn), jnp.float32)],
        compiler_params=pltpu.CompilerParams(
            dimension_semantics=("parallel", "parallel", "arbitrary"),
            vmem_limit_bytes=d["vmem"],
        ),
        cost_estimate=cost,
    )(x, w)


# ----------------------------------------------------------------------------
# Kernel 2: flash-style attention.
#   grid = (B*H, S//tq, S//tkv); the kv axis is the innermost "arbitrary"
#   reduction axis; m/l/acc live in VMEM scratch so the (S,S) scores never
#   materialize.  Per-(b,h) Q/K/V blocks are (tq|tkv, d_k) -> full-width
#   (lane-dense) loads and stores, no in-kernel sub-128 lane slicing.
# ----------------------------------------------------------------------------
def _flash_attn_kernel(q_ref, k_ref, v_ref, mask_ref, o_ref,
                       m_sc, l_sc, acc_sc, *, scale):
    ki = pl.program_id(2)

    @pl.when(ki == 0)
    def _init():
        m_sc[...] = jnp.full(m_sc.shape, -1e30, jnp.float32)
        l_sc[...] = jnp.zeros_like(l_sc)
        acc_sc[...] = jnp.zeros_like(acc_sc)

    q = q_ref[0]        # (tq, d_k)
    k = k_ref[0]        # (tkv, d_k)
    v = v_ref[0]        # (tkv, d_k)
    mask = mask_ref[0]  # (tq, tkv)  bf16, 1 = keep / 0 = masked

    # scores = (Q @ K^T) / sqrt(d_k), K consumed without a materialized transpose.
    s = lax.dot_general(
        q, k,
        dimension_numbers=(((1,), (1,)), ((), ())),
        preferred_element_type=jnp.float32,
    ) * scale
    # Exact masked_fill_(-1e9) semantics of the PyTorch module.
    s = jnp.where(mask == 0, jnp.float32(-1e9), s)

    # Online softmax update (all softmax math stays in f32).
    m_prev = m_sc[...]
    m_new = jnp.maximum(m_prev, jnp.max(s, axis=-1, keepdims=True))
    alpha = jnp.exp(m_prev - m_new)
    p = jnp.exp(s - m_new)
    l_sc[...] = alpha * l_sc[...] + jnp.sum(p, axis=-1, keepdims=True)
    acc_sc[...] = alpha * acc_sc[...] + jnp.dot(
        p.astype(v.dtype), v, preferred_element_type=jnp.float32)
    m_sc[...] = m_new

    @pl.when(ki == pl.num_programs(2) - 1)
    def _finalize():
        # Exact divide (no approx reciprocal) -> matches PyTorch softmax.
        o_ref[0, :, :] = (acc_sc[...] / l_sc[...]).astype(o_ref.dtype)


def pallas_flash_attention(qh, kh, vh, mask3, *, scale, out_dtype=None):
    """qh/kh/vh: (B*H, S, d_k); mask3: (1, S, S) or (B*H, S, S) bf16 0/1 plane."""
    BH, S, d_k = qh.shape
    out_dtype = out_dtype if out_dtype is not None else qh.dtype
    d = _tpu_defaults()

    tq = _pick_tile(S, 256, 8)     # sublane dim of q / scores tiles
    tkv = _pick_tile(S, 512, 128)  # lane dim of scores / sublane dim of k,v
    nq, nkv = S // tq, S // tkv

    per_bh = mask3.shape[0] != 1
    if per_bh:
        mask_map = lambda bh, qi, ki: (bh, qi, ki)
    else:
        mask_map = lambda bh, qi, ki: (0, qi, ki)

    cost = pl.CostEstimate(
        flops=int(4 * BH * S * S * d_k),
        transcendentals=int(BH * S * S),
        bytes_accessed=int(qh.dtype.itemsize * 3 * BH * S * d_k
                           + mask3.dtype.itemsize * mask3.size
                           + jnp.dtype(out_dtype).itemsize * BH * S * d_k),
    )
    return pl.pallas_call(
        partial(_flash_attn_kernel, scale=scale),
        out_shape=jax.ShapeDtypeStruct((BH, S, d_k), out_dtype),
        grid=(BH, nq, nkv),
        in_specs=[
            pl.BlockSpec((1, tq, d_k), lambda bh, qi, ki: (bh, qi, 0)),
            pl.BlockSpec((1, tkv, d_k), lambda bh, qi, ki: (bh, ki, 0)),
            pl.BlockSpec((1, tkv, d_k), lambda bh, qi, ki: (bh, ki, 0)),
            pl.BlockSpec((1, tq, tkv), mask_map),
        ],
        out_specs=pl.BlockSpec((1, tq, d_k), lambda bh, qi, ki: (bh, qi, 0)),
        scratch_shapes=[
            pltpu.VMEM((tq, 1), jnp.float32),     # running max  m
            pltpu.VMEM((tq, 1), jnp.float32),     # running sum  l
            pltpu.VMEM((tq, d_k), jnp.float32),   # output accumulator
        ],
        compiler_params=pltpu.CompilerParams(
            dimension_semantics=("parallel", "parallel", "arbitrary"),
            vmem_limit_bytes=d["vmem"],
        ),
        cost_estimate=cost,
    )(qh, kh, vh, mask3)


# ----------------------------------------------------------------------------
# Mask plumbing: the PyTorch module does `A.masked_fill_(mask == 0, -1e9)` with
# full broadcasting against (B, H, S, S).  We ship a compact bf16 0/1 plane:
# (1, S, S) when the mask broadcasts over batch & heads, (B*H, S, S) otherwise.
# ----------------------------------------------------------------------------
def _prepare_mask(mask, B, H, S, dtype=jnp.bfloat16):
    if mask is None:
        return jnp.ones((1, S, S), dtype=dtype)
    m = jnp.asarray(mask)
    while m.ndim < 4:
        m = m[None]
    per_bh = (m.shape[0] > 1) or (m.shape[1] > 1)
    if per_bh:
        m = jnp.broadcast_to(m, (B, H, S, S)).reshape(B * H, S, S)
    else:
        m = jnp.broadcast_to(m, (1, 1, S, S)).reshape(1, S, S)
    return (m != 0).astype(dtype)   # exact 0/1 regardless of input dtype


# ----------------------------------------------------------------------------
# Full MultiHeadAttention forward (matches the PyTorch module semantics).
# Dropout is constructed in __init__ but never applied in forward -> omitted.
# Forward hooks only record views for introspection -> no math to translate.
# ----------------------------------------------------------------------------
def multi_head_attention(q, k, v, mask, params, num_heads, *,
                         mxu_dtype=jnp.float32):
    B, S, d_model = q.shape
    assert d_model % num_heads == 0, "d_model is not divisible by num_heads!"
    d_k = d_model // num_heads
    cdt = jnp.dtype(mxu_dtype)          # MXU operand / intermediate dtype
    out_f32 = jnp.float32

    # nn.Linear weights are (out, in); y = x @ W.T
    wq_t = params["W_Q"].T.astype(cdt)
    wk_t = params["W_K"].T.astype(cdt)
    wv_t = params["W_V"].T.astype(cdt)
    wo_t = params["W_O"].T.astype(cdt)

    q2d = q.reshape(B * S, d_model).astype(cdt)
    if q is k and k is v:
        # Self-attention: one GEMM against a packed (D, 3D) weight -> the
        # activation is read from HBM exactly once.
        w_pack = jnp.concatenate([wq_t, wk_t, wv_t], axis=1)
        qkv = pallas_matmul(q2d, w_pack, out_dtype=cdt)            # (B*S, 3D)
        Q = qkv[:, :d_model]
        K = qkv[:, d_model:2 * d_model]
        V = qkv[:, 2 * d_model:]
    else:
        # Cross-attention: three independent GEMMs (no activation sharing
        # exists between them, so there is nothing to fuse except call
        # overhead; keeping them separate keeps each kernel's working set
        # small and every store lane-dense).
        K2d = k.reshape(B * S, d_model).astype(cdt)
        V2d = v.reshape(B * S, d_model).astype(cdt)
        Q = pallas_matmul(q2d, wq_t, out_dtype=cdt)
        K = pallas_matmul(K2d, wk_t, out_dtype=cdt)
        V = pallas_matmul(V2d, wv_t, out_dtype=cdt)

    # Head split (one fused XLA layout change per tensor).
    def split_heads(x):
        return (x.reshape(B, S, num_heads, d_k)
                 .transpose(0, 2, 1, 3)
                 .reshape(B * num_heads, S, d_k))

    Qh, Kh, Vh = split_heads(Q), split_heads(K), split_heads(V)
    mask3 = _prepare_mask(mask, B, num_heads, S)

    O = pallas_flash_attention(Qh, Kh, Vh, mask3,
                               scale=1.0 / math.sqrt(d_k), out_dtype=cdt)

    # Head merge + output projection.
    O = (O.reshape(B, num_heads, S, d_k)
          .transpose(0, 2, 1, 3)
          .reshape(B * S, d_model))
    out = pallas_matmul(O, wo_t, out_dtype=out_f32)
    return out.reshape(B, S, d_model)


# ----------------------------------------------------------------------------
# Pure-JAX reference (mirrors the PyTorch module exactly).
# ----------------------------------------------------------------------------
def reference_mha(q, k, v, mask, params, num_heads):
    B, S, d_model = q.shape
    d_k = d_model // num_heads
    Q = q @ params["W_Q"].T
    K = k @ params["W_K"].T
    V = v @ params["W_V"].T
    Q = Q.reshape(B, S, num_heads, d_k).transpose(0, 2, 1, 3)
    K = K.reshape(B, S, num_heads, d_k).transpose(0, 2, 1, 3)
    V = V.reshape(B, S, num_heads, d_k).transpose(0, 2, 1, 3)
    A = Q @ jnp.swapaxes(K, -2, -1) / math.sqrt(d_k)
    if mask is not None:
        A = jnp.where(mask == 0, -1e9, A)
    A = jax.nn.softmax(A, axis=-1)
    O = A @ V
    O = O.transpose(0, 2, 1, 3).reshape(B, S, d_model)
    return O @ params["W_O"].T


if __name__ == "__main__":
    # config: d_model=32, num_heads=4 (dropout is unused in forward)
    B, S, d_model, num_heads = 2, 8, 32, 4

    key = jax.random.PRNGKey(0)
    kq, kk, kv, kwq, kwk, kwv, kwo = jax.random.split(key, 7)

    q = jax.random.normal(kq, (B, S, d_model), dtype=jnp.float32)
    k = jax.random.normal(kk, (B, S, d_model), dtype=jnp.float32)
    v = jax.random.normal(kv, (B, S, d_model), dtype=jnp.float32)

    # deterministic weights, nn.Linear convention (out_features, in_features)
    scale = 1.0 / math.sqrt(d_model)
    params = {
        "W_Q": jax.random.uniform(kwq, (d_model, d_model), jnp.float32, -scale, scale),
        "W_K": jax.random.uniform(kwk, (d_model, d_model), jnp.float32, -scale, scale),
        "W_V": jax.random.uniform(kwv, (d_model, d_model), jnp.float32, -scale, scale),
        "W_O": jax.random.uniform(kwo, (d_model, d_model), jnp.float32, -scale, scale),
    }

    # causal mask (1, 1, S, S); zeros mean "masked"
    mask = jnp.tril(jnp.ones((S, S), dtype=jnp.int32))[None, None]

    # --- cross-attention (distinct q, k, v), f32 MXU operands ---------------
    out = multi_head_attention(q, k, v, mask, params, num_heads)
    out = jax.block_until_ready(out)
    ref = reference_mha(q, k, v, mask, params, num_heads)
    assert out.shape == (B, S, d_model)
    assert jnp.allclose(out, ref, atol=2e-3, rtol=2e-3), \
        "mismatch vs reference (cross-attn, f32)"

    # --- self-attention (q is k is v) -> packed-weight fused QKV GEMM -------
    out_sa = multi_head_attention(q, q, q, mask, params, num_heads)
    out_sa = jax.block_until_ready(out_sa)
    ref_sa = reference_mha(q, q, q, mask, params, num_heads)
    assert jnp.allclose(out_sa, ref_sa, atol=2e-3, rtol=2e-3), \
        "mismatch vs reference (self-attn, f32)"

    # --- no-mask path --------------------------------------------------------
    out_nm = multi_head_attention(q, k, v, None, params, num_heads)
    out_nm = jax.block_until_ready(out_nm)
    ref_nm = reference_mha(q, k, v, None, params, num_heads)
    assert jnp.allclose(out_nm, ref_nm, atol=2e-3, rtol=2e-3), \
        "mismatch vs reference (no mask, f32)"

    # --- bf16 MXU operands (perf path; f32 accumulation & softmax) ----------
    out_bf16 = multi_head_attention(q, k, v, mask, params, num_heads,
                                    mxu_dtype=jnp.bfloat16)
    out_bf16 = jax.block_until_ready(out_bf16)
    assert jnp.allclose(out_bf16, ref, atol=6e-2, rtol=6e-2), \
        "mismatch vs reference (cross-attn, bf16 MXU)"

    print("KERNEL_OK")
</pallas_src>

<mosaic_0001>
module attributes {stable_mosaic.version = 11 : i64} {
  func.func @_matmul_kernel(%arg0: i32, %arg1: i32, %arg2: i32, %arg3: memref<16x32xf32, #tpu.memory_space<vmem>>, %arg4: memref<32x32xf32, #tpu.memory_space<vmem>>, %arg5: memref<16x32xf32, #tpu.memory_space<vmem>>, %arg6: memref<16x32xf32, #tpu.memory_space<vmem>>) attributes {dimension_semantics = [#tpu.dimension_semantics<parallel>, #tpu.dimension_semantics<parallel>, #tpu.dimension_semantics<arbitrary>], iteration_bounds = array<i64: 1, 1, 1>, scalar_prefetch = 0 : i64, scratch_operands = 1 : i64, tpu.core_type = #tpu.core_type<tc>, window_params = [{transform_indices = @transform_0, window_bounds = array<i64: 16, 32>}, {transform_indices = @transform_1, window_bounds = array<i64: 32, 32>}, {transform_indices = @transform_2, window_bounds = array<i64: 16, 32>}]} {
    %c0_i32 = arith.constant 0 : i32
    %0 = arith.cmpi eq, %arg2, %c0_i32 : i32
    %1 = arith.extui %0 : i1 to i32
    %c0_i32_0 = arith.constant 0 : i32
    %2 = arith.cmpi ne, %1, %c0_i32_0 : i32
    scf.if %2 {
      %cst_10 = arith.constant 0.000000e+00 : f32
      %12 = vector.broadcast %cst_10 : f32 to vector<16x32xf32>
      %c0_11 = arith.constant 0 : index
      %c0_12 = arith.constant 0 : index
      %13 = vector.load %arg6[%c0_11, %c0_12] : memref<16x32xf32, #tpu.memory_space<vmem>>, vector<16x32xf32>
      tpu.vector_store %arg6[%c0_11, %c0_12], %12 {strides = array<i32>} : memref<16x32xf32, #tpu.memory_space<vmem>>, vector<16x32xf32>,
    } else {
    }
    %c0 = arith.constant 0 : index
    %c0_1 = arith.constant 0 : index
    %3 = vector.load %arg6[%c0, %c0_1] : memref<16x32xf32, #tpu.memory_space<vmem>>, vector<16x32xf32>
    %c0_2 = arith.constant 0 : index
    %c0_3 = arith.constant 0 : index
    %4 = vector.load %arg3[%c0_2, %c0_3] : memref<16x32xf32, #tpu.memory_space<vmem>>, vector<16x32xf32>
    %c0_4 = arith.constant 0 : index
    %c0_5 = arith.constant 0 : index
    %5 = vector.load %arg4[%c0_4, %c0_5] : memref<32x32xf32, #tpu.memory_space<vmem>>, vector<32x32xf32>
    %cst = arith.constant dense<0.000000e+00> : vector<16x32xf32>
    %6 = tpu.matmul %4, %5, %cst {dimension_numbers = #tpu.dot_dimension_numbers<[1], [0], [0], [1], [0, 0, 1, 1], [], []>} : vector<16x32xf32>, vector<32x32xf32>, vector<16x32xf32> -> vector<16x32xf32>
    %7 = arith.addf %3, %6 : vector<16x32xf32>
    %c0_6 = arith.constant 0 : index
    %c0_7 = arith.constant 0 : index
    %8 = vector.load %arg6[%c0_6, %c0_7] : memref<16x32xf32, #tpu.memory_space<vmem>>, vector<16x32xf32>
    tpu.vector_store %arg6[%c0_6, %c0_7], %7 {strides = array<i32>} : memref<16x32xf32, #tpu.memory_space<vmem>>, vector<16x32xf32>,
    %c0_i32_8 = arith.constant 0 : i32
    %9 = arith.cmpi eq, %arg2, %c0_i32_8 : i32
    %10 = arith.extui %9 : i1 to i32
    %c0_i32_9 = arith.constant 0 : i32
    %11 = arith.cmpi ne, %10, %c0_i32_9 : i32
    scf.if %11 {
      %c0_10 = arith.constant 0 : index
      %c0_11 = arith.constant 0 : index
      %12 = vector.load %arg6[%c0_10, %c0_11] : memref<16x32xf32, #tpu.memory_space<vmem>>, vector<16x32xf32>
      %c0_12 = arith.constant 0 : index
      %c0_13 = arith.constant 0 : index
      %13 = vector.load %arg5[%c0_12, %c0_13] : memref<16x32xf32, #tpu.memory_space<vmem>>, vector<16x32xf32>
      tpu.vector_store %arg5[%c0_12, %c0_13], %12 {strides = array<i32>} : memref<16x32xf32, #tpu.memory_space<vmem>>, vector<16x32xf32>,
    } else {
    }
    return
  }
  func.func @transform_0(%arg0: i32, %arg1: i32, %arg2: i32) -> (i32, i32) {
    %c0_i32 = arith.constant 0 : i32
    return %arg0, %arg2 : i32, i32
  }
  func.func @transform_1(%arg0: i32, %arg1: i32, %arg2: i32) -> (i32, i32) {
    %c0_i32 = arith.constant 0 : i32
    return %arg2, %arg1 : i32, i32
  }
  func.func @transform_2(%arg0: i32, %arg1: i32, %arg2: i32) -> (i32, i32) {
    %c0_i32 = arith.constant 0 : i32
    return %arg0, %arg1 : i32, i32
  }
}

</mosaic_0001>

<llo_original>
// kernel: tpu_custom_call.1
$region0: #{tpu_custom_call.1}
  #allocation0 [shape = 'u32[]', space=smem, size = 0x4, offset = 0x4, fixed_abs, tag = 'smem constant byte address 0x4 - core index']
  #allocation1 [shape = 'u32[72,128]{1,0:T(1,128)}', space=vmem, size = 0x9000, scoped, tag = 'internal scratch']
  #allocation2 [shape = 'f32[16,32]{1,0:T(8,128)}', space=vmem, size = 0x2000, scoped, tag = 'scratch operand']
  %s0 = inlined_call_operand.hbm [shape: f32[16,32], index: 0, kind: input, shape index: {}]
  %s1 = inlined_call_operand.hbm [shape: f32[32,32], index: 1, kind: input, shape index: {}]
  %s2 = inlined_call_operand.hbm [shape: f32[16,32], index: 2, kind: output, shape index: {}]
  %s3 = sld [smem:[#allocation0]]
  $region34: #{tpu_custom_call.1} parent=0
    _
  %s5 = ssub.s32 1, %s3
  %s6 = scalar_select 0, %s5, %s3
  $region1: #{tpu_custom_call.1} parent=0
    #allocation3 [shape = 'u8[8192]{0}', space=vmem, size = 0x2000, scoped, tag = 'input window, operand 0, single buffered']
    #allocation4 [shape = 's32[1]{0}', space=sflag, size = 0x4, scoped, tag = 'scoped memory for tpu_custom_call.1']
    #allocation5 [shape = 's32[1]{0}', space=sflag, size = 0x4, scoped, tag = 'scoped memory for tpu_custom_call.1']
    #allocation6 [shape = 'u8[16384]{0}', space=vmem, size = 0x4000, scoped, tag = 'input window, operand 1, single buffered']
    #allocation7 [shape = 's32[1]{0}', space=sflag, size = 0x4, scoped, tag = 'scoped memory for tpu_custom_call.1']
    #allocation8 [shape = 'u8[8192]{0}', space=vmem, size = 0x2000, scoped, tag = 'output window, operand 0, single buffered']
    %7 = vsyncpa [#allocation4], 0
    %8 = vsyncpa [#allocation7], 0
    %9 = vsyncpa [#allocation5], 0
    // Predicated region
    $region2: #{tpu_custom_call.1} parent=1 // pred_check
      _
    $region3: #{tpu_custom_call.1} parent=1 // pred_check_branch
      %11 = sbr.rel (0) target = $region5
    $region4: #{tpu_custom_call.1} parent=1 // pred_region
      %13 = vsyncadd [#allocation4], 0
      %s14 = sshll.u32 %s0, 4
      %s15 = int_to_ptr.hbm [resolvable:$true] %s14
      %s16 = sshll.u32 [#allocation3], 4
      %s17 = int_to_ptr.vmem [resolvable:$true] %s16
      %22 = dma.hbm_to_vmem [thread:$0]  %s15, 256, %s17, [#allocation4], 128, 128, 8
    $region5: #{tpu_custom_call.1} parent=1 // pred_fallthru
      _
    // Predicated region
    $region6: #{tpu_custom_call.1} parent=1 // pred_check
      _
    $region7: #{tpu_custom_call.1} parent=1 // pred_check_branch
      %24 = sbr.rel (0) target = $region9
    $region8: #{tpu_custom_call.1} parent=1 // pred_region
      %26 = vsyncadd [#allocation7], 0
      %s27 = sshll.u32 %s1, 4
      %s28 = int_to_ptr.hbm [resolvable:$true] %s27
      %s29 = sshll.u32 [#allocation6], 4
      %s30 = int_to_ptr.vmem [resolvable:$true] %s29
      %35 = dma.hbm_to_vmem [thread:$0]  %s28, 512, %s30, [#allocation7], 128, 128, 8
    $region9: #{tpu_custom_call.1} parent=1 // pred_fallthru
      _
    // Predicated region
    $region10: #{tpu_custom_call.1} parent=1 // pred_check
      _
    $region11: #{tpu_custom_call.1} parent=1 // pred_check_branch
      %37 = sbr.rel (0) target = $region13
    $region12: #{tpu_custom_call.1} parent=1 // pred_region
      %39 = dma.done [#allocation4], 256
    $region13: #{tpu_custom_call.1} parent=1 // pred_fallthru
      _
    // Predicated region
    $region14: #{tpu_custom_call.1} parent=1 // pred_check
      _
    $region15: #{tpu_custom_call.1} parent=1 // pred_check_branch
      %41 = sbr.rel (0) target = $region17
    $region16: #{tpu_custom_call.1} parent=1 // pred_region
      %43 = dma.done [#allocation7], 512
    $region17: #{tpu_custom_call.1} parent=1 // pred_fallthru
      _
    %p44 = scmp.eq.s32.totalorder 0, 0
    // Predicated region
    $region18: #{tpu_custom_call.1} parent=1 // pred_check
      %p45 = pneg %p44
    $region19: #{tpu_custom_call.1} parent=1 // pred_check_branch
      %47 = sbr.rel (%p45) target = $region21
    $region20: #{tpu_custom_call.1} parent=1 // pred_region
      %vm48 = vcmask 261120
      %49 = vst.msk [vmem:[#allocation2] sm:$0xff] %vm48, 0.0
      %50 = vst.msk [vmem:[#allocation2 + $0x8] sm:$0xff] %vm48, 0.0
    $region21: #{tpu_custom_call.1} parent=1 // pred_fallthru
      _
    %v51 = vld [vmem:[#allocation2] sm:$0xff]
    %v52 = vld [vmem:[#allocation2 + $0x8] sm:$0xff]
    %v53 = vld [vmem:[#allocation3] sm:$0xff]
    %v54 = vld [vmem:[#allocation3 + $0x8] sm:$0xff]
    %v55 = vld [vmem:[#allocation6] sm:$0xff]
    %v56 = vld [vmem:[#allocation6 + $0x8] sm:$0xff]
    %v57 = vld [vmem:[#allocation6 + $0x10] sm:$0xff]
    %v58 = vld [vmem:[#allocation6 + $0x18] sm:$0xff]
    %vm59 = vcmask 261120
    %v61 = vsel %vm59, %v53, 0
    %v64 = vsel %vm59, %v54, 0
    %66 = vmatpush.msra.mxu0 0.0
    %67 = vmatpush.msra.mxu0 0.0
    %68 = vmatpush.msra.mxu0 0.0
    %69 = vmatpush.msra.mxu0 0.0
    %70 = vmatpush.msra.mxu0 0.0
    %71 = vmatpush.msra.mxu0 0.0
    %72 = vmatpush.msra.mxu0 0.0
    %73 = vmatpush.msra.mxu0 0.0
    %74 = vmatpush.msra.mxu0 0.0
    %75 = vmatpush.msra.mxu0 0.0
    %76 = vmatpush.msra.mxu0 0.0
    %77 = vmatpush.msra.mxu0 0.0
    %78 = vmatpush.msra.mxu0 %v58
    %79 = vmatpush.msra.mxu0 %v57
    %80 = vmatpush.msra.mxu0 %v56
    %81 = vmatpush.msra.mxu0 %v55
    %82 = vmatmul.f32.gmra.mxu0 %v61
    %v83 = vpop.f32.mrf.mxu0
    %v84 = vadd.f32 0.0, %v83
    %85 = vmatmul.f32.gmra.mxu0 %v64
    %v86 = vpop.f32.mrf.mxu0
    %v87 = vadd.f32 0.0, %v86
    %88 = vdwg.mxu0
    %v89 = vadd.f32 %v51, %v84
    %v90 = vadd.f32 %v52, %v87
    %91 = vst.msk [vmem:[#allocation2] sm:$0xff] %vm59, %v89
    %92 = vst.msk [vmem:[#allocation2 + $0x8] sm:$0xff] %vm59, %v90
    // Predicated region
    $region22: #{tpu_custom_call.1} parent=1 // pred_check
      %p93 = pneg %p44
    $region23: #{tpu_custom_call.1} parent=1 // pred_check_branch
      %95 = sbr.rel (%p93) target = $region25
    $region24: #{tpu_custom_call.1} parent=1 // pred_region
      %v96 = vld [vmem:[#allocation2] sm:$0xff]
      %v97 = vld [vmem:[#allocation2 + $0x8] sm:$0xff]
      %98 = vst.msk [vmem:[#allocation8] sm:$0xff] %vm59, %v96
      %99 = vst.msk [vmem:[#allocation8 + $0x8] sm:$0xff] %vm59, %v97
    $region25: #{tpu_custom_call.1} parent=1 // pred_fallthru
      _
    // Predicated region
    $region26: #{tpu_custom_call.1} parent=1 // pred_check
      _
    $region27: #{tpu_custom_call.1} parent=1 // pred_check_branch
      %101 = sbr.rel (0) target = $region29
    $region28: #{tpu_custom_call.1} parent=1 // pred_region
      %103 = vsyncadd [#allocation5], 0
      %s104 = sshll.u32 [#allocation8], 4
      %s105 = int_to_ptr.vmem [resolvable:$true] %s104
      %s106 = sshll.u32 %s2, 4
      %s107 = int_to_ptr.hbm [resolvable:$true] %s106
      %112 = dma.vmem_to_hbm [thread:$0]  %s105, 256, %s107, [#allocation5], 128, 128, 8
    $region29: #{tpu_custom_call.1} parent=1 // pred_fallthru
      _
    // Predicated region
    $region30: #{tpu_custom_call.1} parent=1 // pred_check
      _
    $region31: #{tpu_custom_call.1} parent=1 // pred_check_branch
      %114 = sbr.rel (0) target = $region33
    $region32: #{tpu_custom_call.1} parent=1 // pred_region
      %116 = dma.done [#allocation5], 256
    $region33: #{tpu_custom_call.1} parent=1 // pred_fallthru
      _
    %117 = vsyncpa [#allocation4], 1
    %118 = vsyncpa [#allocation7], 1
    %119 = vsyncpa [#allocation5], 1

</llo_original>
